<compile_context>
chip_gen: v5e
topology: v5e:2x2
jax: 0.10.0
libtpu: 0.0.40
codegen_flags: <defaults>
</compile_context>

<pallas_src>
import jax
import jax.numpy as jnp
from jax.experimental import pallas as pl
from jax.experimental.pallas import tpu as pltpu


def _round_up(x, m):
    return ((x + m - 1) // m) * m


def _mf_gather_kernel(ids_ref, uf_hbm, if_hbm, out_ref, ubuf, ibuf, sem):
    # ids_ref : SMEM (2, B) int32     -- row 0 = user ids, row 1 = item ids (prefetched)
    # uf_hbm  : HBM  (n_users, F)     -- user embedding table (never copied wholesale)
    # if_hbm  : HBM  (n_items, F)     -- item embedding table
    # out_ref : VMEM (tb, 1) f32      -- logits for this batch tile
    # ubuf    : VMEM (tb, F)          -- gathered user rows (table dtype)
    # ibuf    : VMEM (tb, F)          -- gathered item rows (table dtype)
    # sem     : DMA semaphores, shape (2,)  -- [user, item]
    tb = ubuf.shape[0]
    total = ids_ref.shape[1]
    base = pl.program_id(0) * tb
    nvalid = jnp.minimum(tb, total - base)   # gather only real rows in the tail tile

    # Issue one row-DMA per (user, item) pair of this tile; user copies signal sem[0],
    # item copies signal sem[1].
    @pl.loop(0, nvalid)
    def _(r):
        uid = ids_ref[0, base + r]
        iid = ids_ref[1, base + r]
        pltpu.make_async_copy(uf_hbm.at[pl.ds(uid, 1), :],
                              ubuf.at[pl.ds(r, 1), :], sem.at[0]).start()
        pltpu.make_async_copy(if_hbm.at[pl.ds(iid, 1), :],
                              ibuf.at[pl.ds(r, 1), :], sem.at[1]).start()

    # Drain: one wait per issued copy.  All copies have identical (1, F) size, so a
    # representative descriptor is used (same pattern as paged attention).
    @pl.loop(0, nvalid)
    def _(r):
        pltpu.make_async_copy(uf_hbm.at[pl.ds(0, 1), :],
                              ubuf.at[pl.ds(0, 1), :], sem.at[0]).wait()
        pltpu.make_async_copy(if_hbm.at[pl.ds(0, 1), :],
                              ibuf.at[pl.ds(0, 1), :], sem.at[1]).wait()

    # Per-row dot product: VPU elementwise multiply + lane (factor-axis) reduction.
    # Rows beyond nvalid hold stale VMEM; their outputs are sliced away in the wrapper.
    prod = ubuf[...].astype(jnp.float32) * ibuf[...].astype(jnp.float32)   # (tb, F)
    out_ref[...] = jnp.sum(prod, axis=1, keepdims=True).astype(out_ref.dtype)


def linear_mf_forward(X, user_factors, item_factors, *, tb_max=256):
    """LinearMatrixFactorization.forward: MF logits (no sigmoid), shape (B, 1)."""
    B = X.shape[0]
    n_users, F = user_factors.shape
    n_items, F_i = item_factors.shape
    assert F == F_i, (F, F_i)

    # Batch tile: multiple of 8 (sublanes), clamped to the real batch, and split so
    # that >= 2 grid tiles exist when B allows it (keeps both v7x TensorCores busy;
    # on v5e/v6e the extra tile only costs ~0.35 us of grid overhead).
    tb = max(8, min(tb_max, _round_up(-(-B // 2), 8)))
    num_tiles = pl.cdiv(B, tb)
    b_pad = num_tiles * tb

    # (2, B) int32 id layout for SMEM scalar prefetch (long axis last to minimize
    # SMEM padding).  This is the only per-call host-side data movement: 2*B ints.
    ids = X[:, :2].astype(jnp.int32).T

    out = pl.pallas_call(
        _mf_gather_kernel,
        out_shape=jax.ShapeDtypeStruct((b_pad, 1), jnp.float32),
        grid_spec=pltpu.PrefetchScalarGridSpec(
            num_scalar_prefetch=1,                      # ids -> SMEM, visible to all tiles
            grid=(num_tiles,),
            in_specs=[
                pl.BlockSpec(memory_space=pl.ANY),      # user table stays in HBM
                pl.BlockSpec(memory_space=pl.ANY),      # item table stays in HBM
            ],
            out_specs=pl.BlockSpec((tb, 1), lambda i, ids: (i, 0)),
            scratch_shapes=[
                pltpu.VMEM((tb, F), user_factors.dtype),   # gathered user rows
                pltpu.VMEM((tb, F), item_factors.dtype),   # gathered item rows
                pltpu.SemaphoreType.DMA((2,)),             # [user, item] completion sems
            ],
        ),
        compiler_params=pltpu.CompilerParams(
            dimension_semantics=("parallel",)),
    )(ids, user_factors, item_factors)

    # Drop padded tail rows; shape (B, 1).
    return out[:B]


if __name__ == "__main__":
    # Deterministic synthetic parameters (torch.nn.Embedding default init: N(0, 1)).
    n_users, n_items, n_factors = 64, 48, 32
    B = 16

    key = jax.random.PRNGKey(0)
    k_u, k_i, k_uid, k_iid = jax.random.split(key, 4)
    user_factors = jax.random.normal(k_u, (n_users, n_factors), dtype=jnp.float32)
    item_factors = jax.random.normal(k_i, (n_items, n_factors), dtype=jnp.float32)
    # scl_embeds=False in this synthetic config, so no row-normalization.

    user_ids = jax.random.randint(k_uid, (B,), 0, n_users, dtype=jnp.int32)
    item_ids = jax.random.randint(k_iid, (B,), 0, n_items, dtype=jnp.int32)
    X = jnp.stack([user_ids, item_ids], axis=1)  # (B, 2) int32

    out = jax.block_until_ready(linear_mf_forward(X, user_factors, item_factors))

    # Pure-JAX reference of the intended forward semantics (no sigmoid).
    ref = jnp.sum(user_factors[user_ids] * item_factors[item_ids],
                  axis=1, keepdims=True)

    assert out.shape == (B, 1), out.shape
    assert jnp.allclose(out, ref, atol=1e-5, rtol=1e-5), "mismatch vs reference"

    # TODO(synk): the reference forward literally calls `super.logits` (a bug that
    # raises at runtime); we implement the intended super().logits without sigmoid.
    print("KERNEL_OK")
</pallas_src>

<mosaic_0001>
module attributes {stable_mosaic.version = 11 : i64} {
  func.func @_mf_gather_kernel(%arg0: i32, %arg1: memref<2x16xi32, #tpu.memory_space<smem>>, %arg2: memref<64x32xf32, #tpu.memory_space<any>>, %arg3: memref<48x32xf32, #tpu.memory_space<any>>, %arg4: memref<8x1xf32, #tpu.memory_space<vmem>>, %arg5: memref<8x32xf32, #tpu.memory_space<vmem>>, %arg6: memref<8x32xf32, #tpu.memory_space<vmem>>, %arg7: memref<2x!tpu.dma_semaphore, #tpu.memory_space<semaphore_mem>>) attributes {dimension_semantics = [#tpu.dimension_semantics<parallel>], iteration_bounds = array<i64: 2>, scalar_prefetch = 1 : i64, scratch_operands = 3 : i64, tpu.core_type = #tpu.core_type<tc>, window_params = [{}, {}, {transform_indices = @transform_2, window_bounds = array<i64: 8, 1>}]} {
    %c8_i32 = arith.constant 8 : i32
    %0 = arith.muli %arg0, %c8_i32 : i32
    %c16_i32 = arith.constant 16 : i32
    %1 = arith.subi %c16_i32, %0 : i32
    %c8_i32_0 = arith.constant 8 : i32
    %2 = arith.minsi %c8_i32_0, %1 : i32
    %c0_i32 = arith.constant 0 : i32
    %3 = arith.subi %2, %c0_i32 : i32
    %c1_i32 = arith.constant 1 : i32
    %c1_i32_1 = arith.constant 1 : i32
    %4 = arith.subi %c1_i32, %c1_i32_1 : i32
    %5 = arith.addi %3, %4 : i32
    %c1_i32_2 = arith.constant 1 : i32
    %6 = arith.divsi %5, %c1_i32_2 : i32
    %c1_i32_3 = arith.constant 1 : i32
    %c0_i32_4 = arith.constant 0 : i32
    %c0_i32_5 = arith.constant 0 : i32
    %7 = arith.subi %6, %c0_i32_5 : i32
    %8 = arith.addi %c0_i32_5, %7 : i32
    %c1_i32_6 = arith.constant 1 : i32
    scf.for %arg8 = %c0_i32_5 to %8 step %c1_i32_6  : i32 {
      %21 = arith.muli %arg8, %c1_i32_3 : i32
      %22 = arith.addi %c0_i32_4, %21 : i32
      %23 = arith.addi %0, %22 : i32
      %c0_20 = arith.constant 0 : index
      %24 = arith.index_cast %23 : i32 to index
      %25 = memref.load %arg1[%c0_20, %24] : memref<2x16xi32, #tpu.memory_space<smem>>
      %26 = arith.addi %0, %22 : i32
      %c1 = arith.constant 1 : index
      %27 = arith.index_cast %26 : i32 to index
      %28 = memref.load %arg1[%c1, %27] : memref<2x16xi32, #tpu.memory_space<smem>>
      %c0_i32_21 = arith.constant 0 : i32
      %c0_i32_22 = arith.constant 0 : i32
      %29 = tpu.memref_slice %arg2[%25, %c0_i32_22] : memref<64x32xf32, #tpu.memory_space<any>> -> memref<1x32xf32, #tpu.memory_space<any>>
      %c0_i32_23 = arith.constant 0 : i32
      %30 = tpu.memref_slice %arg5[%22, %c0_i32_23] : memref<8x32xf32, #tpu.memory_space<vmem>> -> memref<1x32xf32, #tpu.memory_space<vmem>>
      %31 = tpu.memref_slice %arg7[%c0_i32_21] : memref<2x!tpu.dma_semaphore, #tpu.memory_space<semaphore_mem>> -> memref<1x!tpu.dma_semaphore, #tpu.memory_space<semaphore_mem>>
      %32 = tpu.memref_squeeze %31 : memref<1x!tpu.dma_semaphore, #tpu.memory_space<semaphore_mem>> -> memref<!tpu.dma_semaphore, #tpu.memory_space<semaphore_mem>>
      tpu.enqueue_dma source(%29 : memref<1x32xf32, #tpu.memory_space<any>>) target(%30 : memref<1x32xf32, #tpu.memory_space<vmem>>) target_semaphore(%32 : memref<!tpu.dma_semaphore, #tpu.memory_space<semaphore_mem>>)
      %c1_i32_24 = arith.constant 1 : i32
      %c0_i32_25 = arith.constant 0 : i32
      %33 = tpu.memref_slice %arg3[%28, %c0_i32_25] : memref<48x32xf32, #tpu.memory_space<any>> -> memref<1x32xf32, #tpu.memory_space<any>>
      %c0_i32_26 = arith.constant 0 : i32
      %34 = tpu.memref_slice %arg6[%22, %c0_i32_26] : memref<8x32xf32, #tpu.memory_space<vmem>> -> memref<1x32xf32, #tpu.memory_space<vmem>>
      %35 = tpu.memref_slice %arg7[%c1_i32_24] : memref<2x!tpu.dma_semaphore, #tpu.memory_space<semaphore_mem>> -> memref<1x!tpu.dma_semaphore, #tpu.memory_space<semaphore_mem>>
      %36 = tpu.memref_squeeze %35 : memref<1x!tpu.dma_semaphore, #tpu.memory_space<semaphore_mem>> -> memref<!tpu.dma_semaphore, #tpu.memory_space<semaphore_mem>>
      tpu.enqueue_dma source(%33 : memref<1x32xf32, #tpu.memory_space<any>>) target(%34 : memref<1x32xf32, #tpu.memory_space<vmem>>) target_semaphore(%36 : memref<!tpu.dma_semaphore, #tpu.memory_space<semaphore_mem>>)
    }
    %c0_i32_7 = arith.constant 0 : i32
    %9 = arith.subi %2, %c0_i32_7 : i32
    %c1_i32_8 = arith.constant 1 : i32
    %c1_i32_9 = arith.constant 1 : i32
    %10 = arith.subi %c1_i32_8, %c1_i32_9 : i32
    %11 = arith.addi %9, %10 : i32
    %c1_i32_10 = arith.constant 1 : i32
    %12 = arith.divsi %11, %c1_i32_10 : i32
    %c1_i32_11 = arith.constant 1 : i32
    %c0_i32_12 = arith.constant 0 : i32
    %c0_i32_13 = arith.constant 0 : i32
    %13 = arith.subi %12, %c0_i32_13 : i32
    %14 = arith.addi %c0_i32_13, %13 : i32
    %c1_i32_14 = arith.constant 1 : i32
    scf.for %arg8 = %c0_i32_13 to %14 step %c1_i32_14  : i32 {
      %21 = arith.muli %arg8, %c1_i32_11 : i32
      %22 = arith.addi %c0_i32_12, %21 : i32
      %c0_i32_20 = arith.constant 0 : i32
      %c0_i32_21 = arith.constant 0 : i32
      %c0_i32_22 = arith.constant 0 : i32
      %23 = tpu.memref_slice %arg2[%c0_i32_21, %c0_i32_22] : memref<64x32xf32, #tpu.memory_space<any>> -> memref<1x32xf32, #tpu.memory_space<any>>
      %c0_i32_23 = arith.constant 0 : i32
      %c0_i32_24 = arith.constant 0 : i32
      %24 = tpu.memref_slice %arg5[%c0_i32_23, %c0_i32_24] : memref<8x32xf32, #tpu.memory_space<vmem>> -> memref<1x32xf32, #tpu.memory_space<vmem>>
      %25 = tpu.memref_slice %arg7[%c0_i32_20] : memref<2x!tpu.dma_semaphore, #tpu.memory_space<semaphore_mem>> -> memref<1x!tpu.dma_semaphore, #tpu.memory_space<semaphore_mem>>
      %26 = tpu.memref_squeeze %25 : memref<1x!tpu.dma_semaphore, #tpu.memory_space<semaphore_mem>> -> memref<!tpu.dma_semaphore, #tpu.memory_space<semaphore_mem>>
      tpu.wait_dma2 semaphore(%26 : memref<!tpu.dma_semaphore, #tpu.memory_space<semaphore_mem>>) src(%23 : memref<1x32xf32, #tpu.memory_space<any>>) dst(%24 : memref<1x32xf32, #tpu.memory_space<vmem>>)
      %c1_i32_25 = arith.constant 1 : i32
      %c0_i32_26 = arith.constant 0 : i32
      %c0_i32_27 = arith.constant 0 : i32
      %27 = tpu.memref_slice %arg3[%c0_i32_26, %c0_i32_27] : memref<48x32xf32, #tpu.memory_space<any>> -> memref<1x32xf32, #tpu.memory_space<any>>
      %c0_i32_28 = arith.constant 0 : i32
      %c0_i32_29 = arith.constant 0 : i32
      %28 = tpu.memref_slice %arg6[%c0_i32_28, %c0_i32_29] : memref<8x32xf32, #tpu.memory_space<vmem>> -> memref<1x32xf32, #tpu.memory_space<vmem>>
      %29 = tpu.memref_slice %arg7[%c1_i32_25] : memref<2x!tpu.dma_semaphore, #tpu.memory_space<semaphore_mem>> -> memref<1x!tpu.dma_semaphore, #tpu.memory_space<semaphore_mem>>
      %30 = tpu.memref_squeeze %29 : memref<1x!tpu.dma_semaphore, #tpu.memory_space<semaphore_mem>> -> memref<!tpu.dma_semaphore, #tpu.memory_space<semaphore_mem>>
      tpu.wait_dma2 semaphore(%30 : memref<!tpu.dma_semaphore, #tpu.memory_space<semaphore_mem>>) src(%27 : memref<1x32xf32, #tpu.memory_space<any>>) dst(%28 : memref<1x32xf32, #tpu.memory_space<vmem>>)
    }
    %c0 = arith.constant 0 : index
    %c0_15 = arith.constant 0 : index
    %15 = vector.load %arg5[%c0, %c0_15] : memref<8x32xf32, #tpu.memory_space<vmem>>, vector<8x32xf32>
    %c0_16 = arith.constant 0 : index
    %c0_17 = arith.constant 0 : index
    %16 = vector.load %arg6[%c0_16, %c0_17] : memref<8x32xf32, #tpu.memory_space<vmem>>, vector<8x32xf32>
    %17 = arith.mulf %15, %16 : vector<8x32xf32>
    %cst = arith.constant dense<0.000000e+00> : vector<8xf32>
    %18 = vector.multi_reduction <add>, %17, %cst [1] : vector<8x32xf32> to vector<8xf32>
    %19 = vector.shape_cast %18 : vector<8xf32> to vector<8x1xf32>
    %c0_18 = arith.constant 0 : index
    %c0_19 = arith.constant 0 : index
    %20 = vector.load %arg4[%c0_18, %c0_19] : memref<8x1xf32, #tpu.memory_space<vmem>>, vector<8x1xf32>
    tpu.vector_store %arg4[%c0_18, %c0_19], %19 {strides = array<i32>} : memref<8x1xf32, #tpu.memory_space<vmem>>, vector<8x1xf32>,
    return
  }
  func.func @transform_2(%arg0: i32, %arg1: memref<2x16xi32, #tpu.memory_space<smem>>) -> (i32, i32) {
    %c0_i32 = arith.constant 0 : i32
    %c0_i32_0 = arith.constant 0 : i32
    return %arg0, %c0_i32 : i32, i32
  }
}

</mosaic_0001>

<llo_original>
// kernel: tpu_custom_call.1
$region0: #{tpu_custom_call.1}
  #allocation0 [shape = 'u32[]', space=smem, size = 0x4, offset = 0x4, fixed_abs, tag = 'smem constant byte address 0x4 - core index']
  #allocation1 [shape = 'u32[72,128]{1,0:T(1,128)}', space=vmem, size = 0x9000, scoped, tag = 'internal scratch']
  #allocation2 [shape = 'f32[8,32]{1,0:T(8,128)}', space=vmem, size = 0x1000, scoped, tag = 'scratch operand']
  #allocation3 [shape = 'f32[8,32]{1,0:T(8,128)}', space=vmem, size = 0x1000, scoped, tag = 'scratch operand']
  #allocation4 [shape = 's32[2]{0}', space=sflag, size = 0x8, scoped, tag = 'scratch operand']
  #allocation5 [shape = 's32[1]{0}', space=sflag, size = 0x4, scoped, tag = 'scoped memory for tpu_custom_call.1']
  #allocation6 [shape = 'u8[1024]{0}', space=smem, size = 0x400, scoped, tag = 'prefetched SMEM operand 0']
  #allocation7 [shape = 's32[]', space=sflag, size = 0x4, offset = 0, fixed_abs, tag = 'sflag constant byte address 0x0 - dummy sync flag']
  #allocation8 [shape = 's32[]', space=sflag, size = 0x4, offset = 0, fixed_abs, tag = 'sflag constant byte address 0x0 - dummy sync flag']
  %s0 = inlined_call_operand.vmem [shape: s32[2,16], index: 0, kind: input, shape index: {}]
  %s1 = inlined_call_operand.vmem [shape: f32[64,32], index: 1, kind: input, shape index: {}]
  %s2 = inlined_call_operand.vmem [shape: f32[48,32], index: 2, kind: input, shape index: {}]
  %s3 = inlined_call_operand.vmem [shape: f32[16,1], index: 3, kind: output, shape index: {}]
  %s4 = sld [smem:[#allocation0]]
  $region99: #{tpu_custom_call.1} parent=0
    _
  %s6 = ssub.s32 1, %s4
  %s7 = scalar_select 0, %s6, %s4
  %s9 = sshll.u32 %s0, 4
  %s10 = int_to_ptr.vmem [resolvable:$true] %s9
  %12 = dma.vmem_to_smem %s10, 32, [#allocation6], [#allocation5]
  %14 = dma.done [#allocation5], 32
  %15 = sfence
  loop: start=0, step=1, limit=3
  $region2: #{tpu_custom_call.1} parent=0 // loop_pre_header
    _
  $region3: #{tpu_custom_call.1} parent=0 // loop_header
    %s17 = sphi 0, %s21
    %p18 = scmp.ge.s32.totalorder %s17, 3
    %s26 = sphi 0, %s28
    %s29 = sphi 0, %s26
    %s39 = sphi 0, %s29
  $region4: #{tpu_custom_call.1} parent=0 // loop_header_branch
    %20 = sbr.rel (%p18) target = $region8
  $region5: #{tpu_custom_call.1} parent=0 // loop_body
    %s22 = ssub.s32 %s17, 1
    %s23 = sadd.s32 %s17, 1
    %s24 = ssub.s32 %s17, %s23
    %p25 = scmp.eq.s32.totalorder %s24, 0
    %s27 = sadd.s32 %s26, 1
    %s28 = scalar_select %p25, %s26, %s27
    %p30 = pneg %p25
    %p31 = scmp.eq.s32.totalorder %s17, 1
    %p32 = por %p30, %p31
    %p33 = scmp.ne.s32.totalorder %s26, %s29
    %p34 = scmp.eq.s32.totalorder %s17, 0
    %p35 = por %p33, %p34
    %p36 = scmp.ne.s32.totalorder %s26, %s29
    %p37 = scmp.eq.s32.totalorder %s22, 1
    %p38 = por %p36, %p37
    %p40 = scmp.ne.s32.totalorder %s29, %s39
    %p41 = scmp.eq.s32.totalorder %s22, 0
    %p42 = por %p40, %p41
    %p43 = scmp.lt.s32.totalorder %s17, 2
    // Predicated region
    $region9: #{tpu_custom_call.1} parent=5 // pred_check
      %p44 = pneg %p43
    $region10: #{tpu_custom_call.1} parent=5 // pred_check_branch
      %46 = sbr.rel (%p44) target = $region12
    $region11: #{tpu_custom_call.1} parent=5 // pred_region
      %p47 = pneg %p35
      %p48 = pneg %p32
      %p49 = scmp.lt.s32.totalorder %s17, 1
      %s50 = scalar_select %p49, %s17, 1
      %s51 = smul.addr %s50, 8
      %s52 = scalar_lea.vmem %s3, %s51
      %p53 = scmp.lt.s32.totalorder %s17, 1
      %s54 = scalar_select %p53, %s17, 1
      %s55 = smul.addr %s54, 8
      %s56 = scalar_lea.vmem %s3, %s55
      %s57 = smul.u32 %s17, 8
      %s58 = ssub.s32 16, %s57
      %p59 = scmp.lt.s32.totalorder %s58, 8
      %s60 = scalar_select %p59, %s58, 8
      // While loop
      $region13: #{tpu_custom_call.1} parent=11 // loop_pre_header
        _
      $region14: #{tpu_custom_call.1} parent=11 // loop_header
        %s62 = sphi 0, %s64
        %p63 = scmp.ge.s32.totalorder %s62, %s60
      $region15: #{tpu_custom_call.1} parent=11 // loop_header_branch
        %66 = sbr.rel (%p63) target = $region19
      $region16: #{tpu_custom_call.1} parent=11 // loop_body
        %s67 = sadd.s32 %s57, %s62
        %s68 = sld [smem:[#allocation6 + %s67]]
        %s69 = sshra.s32 %s67, 7
        %s70 = sand.u32 %s67, 127
        %s71 = sadd.s32 %s69, 1
        %s72 = smul.u32 %s71, 128
        %s73 = sshra.s32 %s67, 7
        %s74 = sand.u32 %s67, 127
        %s75 = sadd.s32 %s72, %s74
        %s76 = sld [smem:[#allocation6 + %s75]]
        %s77 = scalar_lea.vmem %s1, %s68
        %s78 = scalar_lea.vmem [#allocation2], %s62
        // Predicated region
        $region20: #{tpu_custom_call.1} parent=16 // pred_check
          _
        $region21: #{tpu_custom_call.1} parent=16 // pred_check_branch
          %80 = sbr.rel target = $region23
        $region22: #{tpu_custom_call.1} parent=16 // pred_region
          // Predicated region
          $region35: #{tpu_custom_call.1} parent=22 // pred_check
            _
          $region36: #{tpu_custom_call.1} parent=22 // pred_check_branch
            %96 = sbr.rel (0) target = $region38
          $region37: #{tpu_custom_call.1} parent=22 // pred_region
            %s98 = ssub.s32 2, 1
            loop: start=0, step=1, limit=1
            $region39: #{tpu_custom_call.1} parent=37 // loop_pre_header
              _
            $region40: #{tpu_custom_call.1} parent=37 // loop_header
              %s100 = sphi 0, %s104
              %p101 = scmp.ge.s32.totalorder %s100, 1
              %s105 = sphi %s77, %s77
              %s106 = sphi %s78, %s78
            $region41: #{tpu_custom_call.1} parent=37 // loop_header_branch
              %103 = sbr.rel (%p101) target = $region45
            $region42: #{tpu_custom_call.1} parent=37 // loop_body
              %v107 = vld [vmem:[%s105] sm:%s98]
              %108 = vst [vmem:[%s106] sm:%s98] %v107
            $region43: #{tpu_custom_call.1} parent=37 // loop_footer
              %s104 = sadd.s32 1, %s100
            $region44: #{tpu_custom_call.1} parent=37 // loop_footer_branch
              %99 = sbr.rel target = $region40
            $region45: #{tpu_custom_call.1} parent=37 // loop_exit
              _
          $region38: #{tpu_custom_call.1} parent=22 // pred_fallthru
            _
        $region23: #{tpu_custom_call.1} parent=16 // pred_fallthru
          _
        // Predicated region
        $region24: #{tpu_custom_call.1} parent=16 // pred_check
          _
        $region25: #{tpu_custom_call.1} parent=16 // pred_check_branch
          %82 = sbr.rel (0) target = $region27
        $region26: #{tpu_custom_call.1} parent=16 // pred_region
          %s84 = ssub.s32 2, 1
          loop: start=0, step=1, limit=1
          $region28: #{tpu_custom_call.1} parent=26 // loop_pre_header
            _
          $region29: #{tpu_custom_call.1} parent=26 // loop_header
            %s86 = sphi 0, %s90
            %p87 = scmp.ge.s32.totalorder %s86, 1
            %s91 = sphi %s77, %s77
            %s92 = sphi %s78, %s78
          $region30: #{tpu_custom_call.1} parent=26 // loop_header_branch
            %89 = sbr.rel (%p87) target = $region34
          $region31: #{tpu_custom_call.1} parent=26 // loop_body
            %v93 = vld [vmem:[%s91] sm:%s84]
            %94 = vst [vmem:[%s92] sm:%s84] %v93
          $region32: #{tpu_custom_call.1} parent=26 // loop_footer
            %s90 = sadd.s32 1, %s86
          $region33: #{tpu_custom_call.1} parent=26 // loop_footer_branch
            %85 = sbr.rel target = $region29
          $region34: #{tpu_custom_call.1} parent=26 // loop_exit
            _
        $region27: #{tpu_custom_call.1} parent=16 // pred_fallthru
          _
        // Predicated region
        $region46: #{tpu_custom_call.1} parent=16 // pred_check
          _
        $region47: #{tpu_custom_call.1} parent=16 // pred_check_branch
          %111 = sbr.rel (0) target = $region49
        $region48: #{tpu_custom_call.1} parent=16 // pred_region
          %112 = vsyncadd [#allocation4], 16
        $region49: #{tpu_custom_call.1} parent=16 // pred_fallthru
          _
        %s113 = scalar_lea.vmem %s2, %s76
        %s114 = scalar_lea.vmem [#allocation3], %s62
        %s115 = scalar_lea.sflag [#allocation4], 1
        // Predicated region
        $region50: #{tpu_custom_call.1} parent=16 // pred_check
          _
        $region51: #{tpu_custom_call.1} parent=16 // pred_check_branch
          %117 = sbr.rel target = $region53
        $region52: #{tpu_custom_call.1} parent=16 // pred_region
          // Predicated region
          $region65: #{tpu_custom_call.1} parent=52 // pred_check
            _
          $region66: #{tpu_custom_call.1} parent=52 // pred_check_branch
            %133 = sbr.rel (0) target = $region68
          $region67: #{tpu_custom_call.1} parent=52 // pred_region
            %s135 = ssub.s32 2, 1
            loop: start=0, step=1, limit=1
            $region69: #{tpu_custom_call.1} parent=67 // loop_pre_header
              _
            $region70: #{tpu_custom_call.1} parent=67 // loop_header
              %s137 = sphi 0, %s141
              %p138 = scmp.ge.s32.totalorder %s137, 1
              %s142 = sphi %s113, %s113
              %s143 = sphi %s114, %s114
            $region71: #{tpu_custom_call.1} parent=67 // loop_header_branch
              %140 = sbr.rel (%p138) target = $region75
            $region72: #{tpu_custom_call.1} parent=67 // loop_body
              %v144 = vld [vmem:[%s142] sm:%s135]
              %145 = vst [vmem:[%s143] sm:%s135] %v144
            $region73: #{tpu_custom_call.1} parent=67 // loop_footer
              %s141 = sadd.s32 1, %s137
            $region74: #{tpu_custom_call.1} parent=67 // loop_footer_branch
              %136 = sbr.rel target = $region70
            $region75: #{tpu_custom_call.1} parent=67 // loop_exit
              _
          $region68: #{tpu_custom_call.1} parent=52 // pred_fallthru
            _
        $region53: #{tpu_custom_call.1} parent=16 // pred_fallthru
          _
        // Predicated region
        $region54: #{tpu_custom_call.1} parent=16 // pred_check
          _
        $region55: #{tpu_custom_call.1} parent=16 // pred_check_branch
          %119 = sbr.rel (0) target = $region57
        $region56: #{tpu_custom_call.1} parent=16 // pred_region
          %s121 = ssub.s32 2, 1
          loop: start=0, step=1, limit=1
          $region58: #{tpu_custom_call.1} parent=56 // loop_pre_header
            _
          $region59: #{tpu_custom_call.1} parent=56 // loop_header
            %s123 = sphi 0, %s127
            %p124 = scmp.ge.s32.totalorder %s123, 1
            %s128 = sphi %s113, %s113
            %s129 = sphi %s114, %s114
          $region60: #{tpu_custom_call.1} parent=56 // loop_header_branch
            %126 = sbr.rel (%p124) target = $region64
          $region61: #{tpu_custom_call.1} parent=56 // loop_body
            %v130 = vld [vmem:[%s128] sm:%s121]
            %131 = vst [vmem:[%s129] sm:%s121] %v130
          $region62: #{tpu_custom_call.1} parent=56 // loop_footer
            %s127 = sadd.s32 1, %s123
          $region63: #{tpu_custom_call.1} parent=56 // loop_footer_branch
            %122 = sbr.rel target = $region59
          $region64: #{tpu_custom_call.1} parent=56 // loop_exit
            _
        $region57: #{tpu_custom_call.1} parent=16 // pred_fallthru
          _
        // Predicated region
        $region76: #{tpu_custom_call.1} parent=16 // pred_check
          _
        $region77: #{tpu_custom_call.1} parent=16 // pred_check_branch
          %148 = sbr.rel (0) target = $region79
        $region78: #{tpu_custom_call.1} parent=16 // pred_region
          %149 = vsyncadd %s115, 16
        $region79: #{tpu_custom_call.1} parent=16 // pred_fallthru
          _
      $region17: #{tpu_custom_call.1} parent=11 // loop_footer
        %s64 = sadd.s32 %s62, 1
      $region18: #{tpu_custom_call.1} parent=11 // loop_footer_branch
        %61 = sbr.rel target = $region14
      $region19: #{tpu_custom_call.1} parent=11 // loop_exit
        _
      // While loop
      $region80: #{tpu_custom_call.1} parent=11 // loop_pre_header
        _
      $region81: #{tpu_custom_call.1} parent=11 // loop_header
        %s151 = sphi 0, %s153
        %p152 = scmp.ge.s32.totalorder %s151, %s60
      $region82: #{tpu_custom_call.1} parent=11 // loop_header_branch
        %155 = sbr.rel (%p152) target = $region86
      $region83: #{tpu_custom_call.1} parent=11 // loop_body
        %s156 = smul.u32 1, 1
        %s157 = sshll.u32 %s156, 4
        %158 = dma.done [#allocation4], %s157
        %s159 = scalar_lea.sflag [#allocation4], 1
        %s160 = sshll.u32 %s156, 4
        %161 = dma.done %s159, %s160
      $region84: #{tpu_custom_call.1} parent=11 // loop_footer
        %s153 = sadd.s32 %s151, 1
      $region85: #{tpu_custom_call.1} parent=11 // loop_footer_branch
        %150 = sbr.rel target = $region81
      $region86: #{tpu_custom_call.1} parent=11 // loop_exit
        _
      %v162 = vld [vmem:[#allocation2] sm:$0xff]
      %v163 = vld [vmem:[#allocation3] sm:$0xff]
      %v164 = vmul.f32 %v162, %v163
      %vm165 = vcmask 261120
      %v166 = vsel %vm165, %v164, 0.0
      %167 = vadd.xlane.f32.xlu0 %v166
      %v168 = vpop.xlane.xlu0 %167
      %vm169 = vcmask 7168
      %170 = vst.msk [vmem:[%s56] sm:$0xff] %vm169, %v168
      %p171 = scmp.lt.s32.totalorder %s17, 1
      %s172 = scalar_select %p171, %s17, 1
      %s173 = smul.addr %s172, 8
      %s174 = scalar_lea.vmem %s3, %s173
      // Predicated region
      $region87: #{tpu_custom_call.1} parent=11 // pred_check
        %p175 = pneg %p32
      $region88: #{tpu_custom_call.1} parent=11 // pred_check_branch
        %177 = sbr.rel (%p175) target = $region90
      $region89: #{tpu_custom_call.1} parent=11 // pred_region
        _
      $region90: #{tpu_custom_call.1} parent=11 // pred_fallthru
        _
    $region12: #{tpu_custom_call.1} parent=5 // pred_fallthru
      _
    %p178 = scmp.le.s32.totalorder 1, %s17
    // Predicated region
    $region91: #{tpu_custom_call.1} parent=5 // pred_check
      %p179 = pneg %p178
    $region92: #{tpu_custom_call.1} parent=5 // pred_check_branch
      %181 = sbr.rel (%p179) target = $region94
    $region93: #{tpu_custom_call.1} parent=5 // pred_region
      %s182 = ssub.s32 %s17, 1
      // Predicated region
      $region95: #{tpu_custom_call.1} parent=93 // pred_check
        %p183 = pneg %p38
      $region96: #{tpu_custom_call.1} parent=93 // pred_check_branch
        %185 = sbr.rel (%p183) target = $region98
      $region97: #{tpu_custom_call.1} parent=93 // pred_region
        %p186 = scmp.lt.s32.totalorder %s22, 1
        %s187 = scalar_select %p186, %s22, 1
        %s188 = smul.addr %s187, 8
        %s189 = scalar_lea.vmem %s3, %s188
      $region98: #{tpu_custom_call.1} parent=93 // pred_fallthru
        _
    $region94: #{tpu_custom_call.1} parent=5 // pred_fallthru
      _
  $region6: #{tpu_custom_call.1} parent=0 // loop_footer
    %s21 = sadd.s32 1, %s17
  $region7: #{tpu_custom_call.1} parent=0 // loop_footer_branch
    %16 = sbr.rel target = $region3
  $region8: #{tpu_custom_call.1} parent=0 // loop_exit
    _
  %190 = vsyncmov [#allocation4]
  %s191 = vpop.sfrf %190
  %p192 = scmp.eq.s32.totalorder %s191, 0
  %p193 = pneg %p192
  %195 = shalt.err (%p193)
  %s196 = scalar_lea.sflag [#allocation4], 1
  %197 = vsyncmov %s196
  %s198 = vpop.sfrf %197
  %p199 = scmp.eq.s32.totalorder %s198, 0
  %p200 = pneg %p199
  %202 = shalt.err (%p200)

</llo_original>
